<compile_context>
chip_gen: v7x
topology: tpu7x:2x2x1
jax: 0.10.0
libtpu: 0.0.40
codegen_flags: <defaults>
</compile_context>

<pallas_src>
import jax
import jax.numpy as jnp
from jax.experimental import pallas as pl
from jax.experimental.pallas import tpu as pltpu

_LANE = 128
_SUB = 8


def _round_up(x, m):
    return ((x + m - 1) // m) * m


def _make_linear_kernel(num_features: int):
    def _linear_kernel(w_ref, b_ref, x_ref, o_ref):
        # w_ref: (F,) f32 in SMEM, b_ref: (1,) f32 in SMEM
        # x_ref: (F, TS, 128) f32 in VMEM (batch = sublane_row * 128 + lane)
        # o_ref: (TS, 128) f32 in VMEM    (lane+sublane dense output tile)
        acc = w_ref[0] * x_ref[0] + b_ref[0]          # (TS, 128) VPU FMA
        for f in range(1, num_features):              # static unroll (F=3)
            acc = acc + w_ref[f] * x_ref[f]
        o_ref[...] = acc.astype(o_ref.dtype)

    return _linear_kernel


def linear_regression_forward(x, w, b, *, target_block_bytes=3 << 20):
    """x: (B, F) f32, w: (1, F) f32, b: (1,) f32  ->  (B, 1) f32."""
    B, F = x.shape
    out_features = w.shape[0]
    if out_features != 1:
        raise ValueError("kernel specialised for nn.Linear(F, 1)")

    # --- tile selection ---------------------------------------------------
    R = pl.cdiv(B, _LANE)                      # number of 128-wide batch rows
    # TS from a ~MiB-scale x-block budget: block bytes = TS * 128 * F * 4.
    ts = max(_SUB, (target_block_bytes // (F * _LANE * 4) // _SUB) * _SUB)
    ts = min(ts, _round_up(R, _SUB))           # never bigger than the data
    # v7x has 2 TensorCores: with enough data, make sure the "parallel"
    # batch axis has at least 2 tiles so both cores get work.
    if R > 2 * _SUB and pl.cdiv(R, ts) < 2:
        ts = _round_up(pl.cdiv(R, 2), _SUB)

    R_pad = _round_up(R, ts)
    B_pad = R_pad * _LANE
    grid = (R_pad // ts,)

    # --- repack to a feature-major, lane/sublane-dense slab ----------------
    # (B, F) -> pad -> (B_pad, F) -> (F, B_pad) -> (F, R_pad, 128).
    # Single wrapper-side relayout pass (pad + transpose fuse in XLA).
    xp = jnp.pad(x, ((0, B_pad - B), (0, 0)))
    x_slab = xp.T.reshape(F, R_pad, _LANE)

    y_slab = pl.pallas_call(
        _make_linear_kernel(F),
        out_shape=jax.ShapeDtypeStruct((R_pad, _LANE), x.dtype),
        grid_spec=pltpu.PrefetchScalarGridSpec(
            num_scalar_prefetch=0,
            grid=grid,
            in_specs=[
                # Tiny weight/bias vectors live in SMEM (scalar reads only).
                pl.BlockSpec(memory_space=pltpu.MemorySpace.SMEM),   # w (F,)
                pl.BlockSpec(memory_space=pltpu.MemorySpace.SMEM),   # b (1,)
                # x tile: (F, TS, 128); last two dims are (8k, 128)-aligned.
                pl.BlockSpec((F, ts, _LANE), lambda i: (0, i, 0)),
            ],
            out_specs=pl.BlockSpec((ts, _LANE), lambda i: (i, 0)),
        ),
        compiler_params=pltpu.CompilerParams(
            dimension_semantics=("parallel",),      # batch tiles independent
            vmem_limit_bytes=32 * 1024 * 1024,      # explicit; safe v5e..v7x
        ),
    )(w.reshape(F * out_features), b.reshape(out_features), x_slab)

    # (R_pad, 128) flattens row-major back to batch order; strip the pad.
    # Final (B, 1) reshape kept only to match nn.Linear's output contract.
    return y_slab.reshape(B_pad)[:B].reshape(B, out_features)


if __name__ == "__main__":
    key = jax.random.PRNGKey(0)
    kx, kw, kb, kx2 = jax.random.split(key, 4)

    in_features = 3
    out_features = 1

    # Deterministic parameter init (mimicking nn.Linear's uniform init bound).
    bound = 1.0 / jnp.sqrt(in_features)
    w = jax.random.uniform(kw, (out_features, in_features),
                           minval=-bound, maxval=bound, dtype=jnp.float32)
    b = jax.random.uniform(kb, (out_features,),
                           minval=-bound, maxval=bound, dtype=jnp.float32)

    # Small batch, matching the module's expected usage.
    batch = 8
    x = jax.random.normal(kx, (batch, in_features), dtype=jnp.float32)
    y = jax.block_until_ready(linear_regression_forward(x, w, b))
    y_ref = x @ w.T + b
    assert y.shape == (batch, out_features)
    assert jnp.allclose(y, y_ref, atol=1e-5, rtol=1e-5)

    # Secondary sanity check: odd batch exercising padding + a multi-tile
    # ("parallel") grid.
    batch2 = 4097
    x2 = jax.random.normal(kx2, (batch2, in_features), dtype=jnp.float32)
    y2 = jax.block_until_ready(linear_regression_forward(x2, w, b))
    y2_ref = x2 @ w.T + b
    assert y2.shape == (batch2, out_features)
    assert jnp.allclose(y2, y2_ref, atol=1e-5, rtol=1e-5)

    print("KERNEL_OK")
</pallas_src>

<mosaic_0001>
module attributes {stable_mosaic.version = 11 : i64} {
  func.func @_linear_kernel(%arg0: i32, %arg1: memref<3xf32, #tpu.memory_space<smem>>, %arg2: memref<1xf32, #tpu.memory_space<smem>>, %arg3: memref<3x8x128xf32, #tpu.memory_space<vmem>>, %arg4: memref<8x128xf32, #tpu.memory_space<vmem>>) attributes {dimension_semantics = [#tpu.dimension_semantics<parallel>], iteration_bounds = array<i64: 1>, scalar_prefetch = 0 : i64, scratch_operands = 0 : i64, tpu.core_type = #tpu.core_type<tc>, window_params = [{transform_indices = @transform_0, window_bounds = array<i64: 3>}, {transform_indices = @transform_1, window_bounds = array<i64: 1>}, {transform_indices = @transform_2, window_bounds = array<i64: 3, 8, 128>}, {transform_indices = @transform_3, window_bounds = array<i64: 8, 128>}]} {
    %c0 = arith.constant 0 : index
    %0 = memref.load %arg1[%c0] : memref<3xf32, #tpu.memory_space<smem>>
    %c0_0 = arith.constant 0 : index
    %c0_1 = arith.constant 0 : index
    %c0_2 = arith.constant 0 : index
    %1 = vector.load %arg3[%c0_0, %c0_1, %c0_2] : memref<3x8x128xf32, #tpu.memory_space<vmem>>, vector<1x8x128xf32>
    %2 = vector.shape_cast %1 : vector<1x8x128xf32> to vector<8x128xf32>
    %3 = vector.broadcast %0 : f32 to vector<8x128xf32>
    %4 = arith.mulf %3, %2 : vector<8x128xf32>
    %c0_3 = arith.constant 0 : index
    %5 = memref.load %arg2[%c0_3] : memref<1xf32, #tpu.memory_space<smem>>
    %6 = vector.broadcast %5 : f32 to vector<8x128xf32>
    %7 = arith.addf %4, %6 : vector<8x128xf32>
    %c1 = arith.constant 1 : index
    %8 = memref.load %arg1[%c1] : memref<3xf32, #tpu.memory_space<smem>>
    %c1_4 = arith.constant 1 : index
    %c0_5 = arith.constant 0 : index
    %c0_6 = arith.constant 0 : index
    %9 = vector.load %arg3[%c1_4, %c0_5, %c0_6] : memref<3x8x128xf32, #tpu.memory_space<vmem>>, vector<1x8x128xf32>
    %10 = vector.shape_cast %9 : vector<1x8x128xf32> to vector<8x128xf32>
    %11 = vector.broadcast %8 : f32 to vector<8x128xf32>
    %12 = arith.mulf %11, %10 : vector<8x128xf32>
    %13 = arith.addf %7, %12 : vector<8x128xf32>
    %c2 = arith.constant 2 : index
    %14 = memref.load %arg1[%c2] : memref<3xf32, #tpu.memory_space<smem>>
    %c2_7 = arith.constant 2 : index
    %c0_8 = arith.constant 0 : index
    %c0_9 = arith.constant 0 : index
    %15 = vector.load %arg3[%c2_7, %c0_8, %c0_9] : memref<3x8x128xf32, #tpu.memory_space<vmem>>, vector<1x8x128xf32>
    %16 = vector.shape_cast %15 : vector<1x8x128xf32> to vector<8x128xf32>
    %17 = vector.broadcast %14 : f32 to vector<8x128xf32>
    %18 = arith.mulf %17, %16 : vector<8x128xf32>
    %19 = arith.addf %13, %18 : vector<8x128xf32>
    %c0_10 = arith.constant 0 : index
    %c0_11 = arith.constant 0 : index
    %20 = vector.load %arg4[%c0_10, %c0_11] : memref<8x128xf32, #tpu.memory_space<vmem>>, vector<8x128xf32>
    tpu.vector_store %arg4[%c0_10, %c0_11], %19 {strides = array<i32>} : memref<8x128xf32, #tpu.memory_space<vmem>>, vector<8x128xf32>,
    return
  }
  func.func @transform_0(%arg0: i32) -> i32 {
    %c0_i32 = arith.constant 0 : i32
    %c0_i32_0 = arith.constant 0 : i32
    return %c0_i32 : i32
  }
  func.func @transform_1(%arg0: i32) -> i32 {
    %c0_i32 = arith.constant 0 : i32
    %c0_i32_0 = arith.constant 0 : i32
    return %c0_i32 : i32
  }
  func.func @transform_2(%arg0: i32) -> (i32, i32, i32) {
    %c0_i32 = arith.constant 0 : i32
    %c0_i32_0 = arith.constant 0 : i32
    %c0_i32_1 = arith.constant 0 : i32
    return %c0_i32, %arg0, %c0_i32_0 : i32, i32, i32
  }
  func.func @transform_3(%arg0: i32) -> (i32, i32) {
    %c0_i32 = arith.constant 0 : i32
    %c0_i32_0 = arith.constant 0 : i32
    return %arg0, %c0_i32 : i32, i32
  }
}

</mosaic_0001>

<llo_original>
// kernel: tpu_custom_call.1
$region0: #{tpu_custom_call.1}
  #allocation0 [shape = 'u32[]', space=smem, size = 0x4, offset = 0x4, fixed_abs, tag = 'smem constant byte address 0x4 - core index']
  #allocation1 [shape = 'u32[144,128]{1,0:T(1,128)}', space=vmem, size = 0x12000, scoped, tag = 'internal scratch']
  #allocation2 [shape = 'f32[1]{0:T(128)S(6)}', space=smem, size = 0x200, scoped, tag = 'scoped memory for tpu_custom_call.1']
  %s0 = inlined_call_operand.vmem [shape: f32[3], index: 0, kind: input, shape index: {}]
  %s1 = inlined_call_operand.<no memory space> [shape: f32[1], index: 1, kind: input, shape index: {}]
  %s2 = inlined_call_operand.hbm [shape: f32[3,8,128], index: 2, kind: input, shape index: {}]
  %s3 = inlined_call_operand.hbm [shape: f32[8,128], index: 3, kind: output, shape index: {}]
  %s4 = sld [smem:[#allocation0]]
  $region30: #{tpu_custom_call.1} parent=0
    _
  %s6 = ssub.s32 1, %s4
  %s7 = scalar_select 0, %s6, %s4
  %8 = sst [smem:[#allocation2]] %s1
  $region1: #{tpu_custom_call.1} parent=0
    #allocation3 [shape = 'u8[512]{0}', space=smem, size = 0x200, scoped, tag = 'input window, operand 0, single buffered']
    #allocation4 [shape = 's32[1]{0}', space=sflag, size = 0x4, scoped, tag = 'scoped memory for tpu_custom_call.1']
    #allocation5 [shape = 's32[1]{0}', space=sflag, size = 0x4, scoped, tag = 'scoped memory for tpu_custom_call.1']
    #allocation6 [shape = 's32[1]{0}', space=sflag, size = 0x4, scoped, tag = 'scoped memory for tpu_custom_call.1']
    #allocation7 [shape = 'u8[12288]{0}', space=vmem, size = 0x3000, scoped, tag = 'input window, operand 2, single buffered']
    #allocation8 [shape = 'u8[4096]{0}', space=vmem, size = 0x1000, scoped, tag = 'output window, operand 0, single buffered']
    %9 = vsyncpa [#allocation6], 0
    %10 = vsyncpa [#allocation4], 0
    %11 = vsyncpa [#allocation5], 0
    // Predicated region
    $region2: #{tpu_custom_call.1} parent=1 // pred_check
      _
    $region3: #{tpu_custom_call.1} parent=1 // pred_check_branch
      %13 = sbr.rel (0) target = $region5
    $region4: #{tpu_custom_call.1} parent=1 // pred_region
      %s15 = ssub.s32 16, 16
      %16 = vsyncadd [#allocation6], %s15
      %s18 = sshll.u32 %s0, 4
      %s19 = int_to_ptr.vmem [resolvable:$true] %s18
      %21 = dma.vmem_to_smem %s19, 16, [#allocation3], [#allocation6]
    $region5: #{tpu_custom_call.1} parent=1 // pred_fallthru
      _
    // Predicated region
    $region6: #{tpu_custom_call.1} parent=1 // pred_check
      _
    $region7: #{tpu_custom_call.1} parent=1 // pred_check_branch
      %23 = sbr.rel (0) target = $region9
    $region8: #{tpu_custom_call.1} parent=1 // pred_region
      _
    $region9: #{tpu_custom_call.1} parent=1 // pred_fallthru
      _
    // Predicated region
    $region10: #{tpu_custom_call.1} parent=1 // pred_check
      _
    $region11: #{tpu_custom_call.1} parent=1 // pred_check_branch
      %25 = sbr.rel (0) target = $region13
    $region12: #{tpu_custom_call.1} parent=1 // pred_region
      %s27 = ssub.s32 384, 384
      %28 = vsyncadd [#allocation4], %s27
      %s29 = sshll.u32 [#allocation7], 4
      %s30 = int_to_ptr.vmem [resolvable:$true] %s29
      %35 = dma.hbm_to_vmem [thread:$0]  %s2, 384, %s30, [#allocation4], 128, 128, 8
    $region13: #{tpu_custom_call.1} parent=1 // pred_fallthru
      _
    // Predicated region
    $region14: #{tpu_custom_call.1} parent=1 // pred_check
      _
    $region15: #{tpu_custom_call.1} parent=1 // pred_check_branch
      %37 = sbr.rel (0) target = $region17
    $region16: #{tpu_custom_call.1} parent=1 // pred_region
      %38 = dma.done [#allocation6], 16
    $region17: #{tpu_custom_call.1} parent=1 // pred_fallthru
      _
    // Predicated region
    $region18: #{tpu_custom_call.1} parent=1 // pred_check
      _
    $region19: #{tpu_custom_call.1} parent=1 // pred_check_branch
      %40 = sbr.rel (0) target = $region21
    $region20: #{tpu_custom_call.1} parent=1 // pred_region
      %41 = dma.done [#allocation4], 384
    $region21: #{tpu_custom_call.1} parent=1 // pred_fallthru
      _
    %42 = sfence
    %s43 = sld [smem:[#allocation3]]
    %v44 = vld [vmem:[#allocation7] sm:$0xff]
    %v45 = vstv %s43
    %v46 = vmul.f32 %v45, %v44
    %s47 = sld [smem:[#allocation2]]
    %v48 = vstv %s47
    %v49 = vadd.f32 %v46, %v48
    %s50 = sld [smem:[#allocation3 + $0x1]]
    %s51 = scalar_lea.vmem [#allocation7], 8
    %v52 = vld [vmem:[%s51] sm:$0xff]
    %v53 = vstv %s50
    %v54 = vmul.f32 %v53, %v52
    %v55 = vadd.f32 %v49, %v54
    %s56 = sld [smem:[#allocation3 + $0x2]]
    %s57 = scalar_lea.vmem [#allocation7], 16
    %v58 = vld [vmem:[%s57] sm:$0xff]
    %v59 = vstv %s56
    %v60 = vmul.f32 %v59, %v58
    %v61 = vadd.f32 %v55, %v60
    %62 = vst [vmem:[#allocation8] sm:$0xff] %v61
    // Predicated region
    $region22: #{tpu_custom_call.1} parent=1 // pred_check
      _
    $region23: #{tpu_custom_call.1} parent=1 // pred_check_branch
      %64 = sbr.rel (0) target = $region25
    $region24: #{tpu_custom_call.1} parent=1 // pred_region
      %s66 = ssub.s32 128, 128
      %67 = vsyncadd [#allocation5], %s66
      %s69 = sshll.u32 [#allocation8], 4
      %s70 = int_to_ptr.vmem [resolvable:$true] %s69
      %72 = dma.vmem_to_hbm [thread:$0]  %s70, 128, %s3, [#allocation5]
    $region25: #{tpu_custom_call.1} parent=1 // pred_fallthru
      _
    // Predicated region
    $region26: #{tpu_custom_call.1} parent=1 // pred_check
      _
    $region27: #{tpu_custom_call.1} parent=1 // pred_check_branch
      %74 = sbr.rel (0) target = $region29
    $region28: #{tpu_custom_call.1} parent=1 // pred_region
      %75 = dma.done [#allocation5], 128
    $region29: #{tpu_custom_call.1} parent=1 // pred_fallthru
      _
    %76 = vsyncpa [#allocation4], 1
    %77 = vsyncpa [#allocation5], 1
    %78 = vsyncpa [#allocation6], 1

</llo_original>
